<compile_context>
chip_gen: v6e
topology: v6e:2x2x1
jax: 0.10.0
libtpu: 0.0.40
codegen_flags: <defaults>
</compile_context>

<pallas_src>
import jax
import jax.numpy as jnp
from jax import lax
from jax.experimental import pallas as pl
from jax.experimental.pallas import tpu as pltpu


def _round_up(x, m):
    return ((x + m - 1) // m) * m


def _mlp_kernel(x_ref, w_ref, b_ref, o_ref):
    # x_ref: (tm, K), w_ref: (tn, K) (PyTorch [out, in] layout -> contract dim 1),
    # b_ref: (1, tn) f32, o_ref: (tm, tn)
    y = lax.dot_general(
        x_ref[...], w_ref[...],
        dimension_numbers=(((1,), (1,)), ((), ())),
        preferred_element_type=jnp.float32)            # MXU, f32 accumulate
    y = y + b_ref[...]                                 # VPU bias add (f32)
    o_ref[...] = jnp.tanh(y).astype(o_ref.dtype)       # EUP tanh, cast at store


def mlp_layer(features, weight, bias, *, tm=256, tn=256, compute_dtype=None):
    """tanh(features @ weight.T + bias).

    features: [..., H_in]; weight: [H_out, H_in] (PyTorch nn.Linear layout);
    bias: [H_out]. compute_dtype (e.g. jnp.bfloat16) casts the MXU inputs only;
    accumulation, bias add and tanh stay in f32; output keeps features.dtype.
    """
    orig_shape = features.shape
    K = orig_shape[-1]
    N = weight.shape[0]
    assert weight.shape == (N, K)
    assert bias.shape == (N,)

    x2d = features.reshape(-1, K)
    M = x2d.shape[0]
    out_dtype = features.dtype

    # Optional bf16 MXU inputs (full-rate MXU, half the weight DMA bytes).
    # TODO(synk): in a real model hoist the weight cast to parameter-load time.
    if compute_dtype is not None:
        x2d = x2d.astype(compute_dtype)
        weight = weight.astype(compute_dtype)

    # Lane-dense output: pad the N (output-feature) axis to a multiple of 128
    # so the kernel does unmasked vector stores; slice the result back after.
    Np = _round_up(N, 128)
    if Np != N:
        weight = jnp.pad(weight, ((0, Np - N), (0, 0)))
        bias = jnp.pad(bias, ((0, Np - N),))
    b2d = bias.reshape(1, Np).astype(jnp.float32)

    # Tile sizes: many grid steps so BlockSpec double-buffering overlaps the
    # x-tile / weight-tile DMA and output writeback with the MXU, and so the
    # two "parallel" axes can shard across TensorCores on v7x.
    tm = max(8, min(tm, _round_up(M, 8)))       # f32/bf16 sublane-friendly
    tn = max(128, min(tn, Np))                  # lane multiple of 128
    grid = (pl.cdiv(M, tm), pl.cdiv(Np, tn))

    in_dsize = jnp.dtype(x2d.dtype).itemsize
    out_dsize = jnp.dtype(out_dtype).itemsize
    # Double-buffered x, weight, bias and output tiles (+ headroom).
    vmem_bytes = 2 * (tm * K * in_dsize
                      + tn * K * in_dsize
                      + 8 * tn * 4
                      + tm * tn * out_dsize)
    vmem_limit = min(128 * 1024 * 1024, int(1.5 * vmem_bytes) + (4 << 20))

    cost = pl.CostEstimate(
        flops=2 * M * K * Np,
        transcendentals=M * Np,
        bytes_accessed=(M * K * in_dsize + Np * K * in_dsize
                        + Np * 4 + M * Np * out_dsize),
    )

    out = pl.pallas_call(
        _mlp_kernel,
        out_shape=jax.ShapeDtypeStruct((M, Np), out_dtype),
        grid_spec=pltpu.PrefetchScalarGridSpec(
            num_scalar_prefetch=0,
            grid=grid,
            in_specs=[
                pl.BlockSpec((tm, K), lambda i, j: (i, 0)),   # x row-tile
                pl.BlockSpec((tn, K), lambda i, j: (j, 0)),   # weight col-tile
                pl.BlockSpec((1, tn), lambda i, j: (0, j)),   # bias slice
            ],
            out_specs=pl.BlockSpec((tm, tn), lambda i, j: (i, j)),
        ),
        compiler_params=pltpu.CompilerParams(
            dimension_semantics=("parallel", "parallel"),
            vmem_limit_bytes=vmem_limit,
        ),
        cost_estimate=cost,
    )(x2d, weight, b2d)

    if Np != N:
        out = out[:, :N]
    return out.reshape(orig_shape[:-1] + (N,))


if __name__ == "__main__":
    # config.hidden_size -> small synthetic hidden size
    batch, seq, hidden = 2, 8, 32

    key = jax.random.PRNGKey(0)
    k_x, k_w, k_b = jax.random.split(key, 3)

    features = jax.random.normal(k_x, (batch, seq, hidden), dtype=jnp.float32)
    # nn.Linear(hidden, hidden): weight [out, in], bias [out]
    weight = jax.random.normal(k_w, (hidden, hidden), dtype=jnp.float32) * 0.02
    bias = jax.random.normal(k_b, (hidden,), dtype=jnp.float32) * 0.02

    ref = jnp.tanh(features @ weight.T + bias)

    # Full-precision path (exact semantics of the PyTorch forward).
    out_f32 = jax.block_until_ready(mlp_layer(features, weight, bias))
    assert out_f32.shape == features.shape
    assert jnp.allclose(out_f32, ref, atol=1e-5, rtol=1e-5)

    # bf16 MXU path (perf mode: bf16 inputs, f32 accumulate/bias/tanh).
    out_bf16 = jax.block_until_ready(
        mlp_layer(features, weight, bias, compute_dtype=jnp.bfloat16))
    assert out_bf16.shape == features.shape
    assert jnp.allclose(out_bf16, ref, atol=3e-2, rtol=3e-2)

    print("KERNEL_OK")
</pallas_src>

<mosaic_0001>
module attributes {stable_mosaic.version = 11 : i64} {
  func.func @_mlp_kernel(%arg0: i32, %arg1: i32, %arg2: memref<16x32xf32, #tpu.memory_space<vmem>>, %arg3: memref<128x32xf32, #tpu.memory_space<vmem>>, %arg4: memref<1x128xf32, #tpu.memory_space<vmem>>, %arg5: memref<16x128xf32, #tpu.memory_space<vmem>>) attributes {dimension_semantics = [#tpu.dimension_semantics<parallel>, #tpu.dimension_semantics<parallel>], iteration_bounds = array<i64: 1, 1>, scalar_prefetch = 0 : i64, scratch_operands = 0 : i64, tpu.core_type = #tpu.core_type<tc>, window_params = [{transform_indices = @transform_0, window_bounds = array<i64: 16, 32>}, {transform_indices = @transform_1, window_bounds = array<i64: 128, 32>}, {transform_indices = @transform_2, window_bounds = array<i64: 1, 128>}, {transform_indices = @transform_3, window_bounds = array<i64: 16, 128>}]} {
    %c0 = arith.constant 0 : index
    %c0_0 = arith.constant 0 : index
    %0 = vector.load %arg2[%c0, %c0_0] : memref<16x32xf32, #tpu.memory_space<vmem>>, vector<16x32xf32>
    %c0_1 = arith.constant 0 : index
    %c0_2 = arith.constant 0 : index
    %1 = vector.load %arg3[%c0_1, %c0_2] : memref<128x32xf32, #tpu.memory_space<vmem>>, vector<128x32xf32>
    %cst = arith.constant dense<0.000000e+00> : vector<16x128xf32>
    %2 = tpu.matmul %0, %1, %cst {dimension_numbers = #tpu.dot_dimension_numbers<[1], [1], [0], [0], [0, 0, 1, 0], [], []>} : vector<16x32xf32>, vector<128x32xf32>, vector<16x128xf32> -> vector<16x128xf32>
    %c0_3 = arith.constant 0 : index
    %c0_4 = arith.constant 0 : index
    %3 = vector.load %arg4[%c0_3, %c0_4] : memref<1x128xf32, #tpu.memory_space<vmem>>, vector<1x128xf32>
    %4 = vector.broadcast %3 : vector<1x128xf32> to vector<16x128xf32>
    %5 = arith.addf %2, %4 : vector<16x128xf32>
    %6 = math.tanh %5 : vector<16x128xf32>
    %c0_5 = arith.constant 0 : index
    %c0_6 = arith.constant 0 : index
    %7 = vector.load %arg5[%c0_5, %c0_6] : memref<16x128xf32, #tpu.memory_space<vmem>>, vector<16x128xf32>
    tpu.vector_store %arg5[%c0_5, %c0_6], %6 {strides = array<i32>} : memref<16x128xf32, #tpu.memory_space<vmem>>, vector<16x128xf32>,
    return
  }
  func.func @transform_0(%arg0: i32, %arg1: i32) -> (i32, i32) {
    %c0_i32 = arith.constant 0 : i32
    %c0_i32_0 = arith.constant 0 : i32
    return %arg0, %c0_i32 : i32, i32
  }
  func.func @transform_1(%arg0: i32, %arg1: i32) -> (i32, i32) {
    %c0_i32 = arith.constant 0 : i32
    %c0_i32_0 = arith.constant 0 : i32
    return %arg1, %c0_i32 : i32, i32
  }
  func.func @transform_2(%arg0: i32, %arg1: i32) -> (i32, i32) {
    %c0_i32 = arith.constant 0 : i32
    %c0_i32_0 = arith.constant 0 : i32
    return %c0_i32, %arg1 : i32, i32
  }
  func.func @transform_3(%arg0: i32, %arg1: i32) -> (i32, i32) {
    %c0_i32 = arith.constant 0 : i32
    return %arg0, %arg1 : i32, i32
  }
}

</mosaic_0001>

<llo_original>
// kernel: tpu_custom_call.1
$region0: #{tpu_custom_call.1}
  #allocation0 [shape = 'u32[]', space=smem, size = 0x4, offset = 0x4, fixed_abs, tag = 'smem constant byte address 0x4 - core index']
  #allocation1 [shape = 'u32[144,128]{1,0:T(1,128)}', space=vmem, size = 0x12000, scoped, tag = 'internal scratch']
  %s0 = inlined_call_operand.vmem [shape: f32[16,32], index: 0, kind: input, shape index: {}]
  %s1 = inlined_call_operand.vmem [shape: f32[128,32], index: 1, kind: input, shape index: {}]
  %s2 = inlined_call_operand.vmem [shape: f32[1,128], index: 2, kind: input, shape index: {}]
  %s3 = inlined_call_operand.hbm [shape: f32[16,128], index: 3, kind: output, shape index: {}]
  %s4 = sld [smem:[#allocation0]]
  $region22: #{tpu_custom_call.1} parent=0
    _
  %s6 = ssub.s32 1, %s4
  %s7 = scalar_select 0, %s6, %s4
  $region1: #{tpu_custom_call.1} parent=0
    #allocation2 [shape = 'u8[8192]{0}', space=vmem, size = 0x2000, scoped, tag = 'output window, operand 0, single buffered']
    #allocation3 [shape = 's32[1]{0}', space=sflag, size = 0x4, scoped, tag = 'scoped memory for tpu_custom_call.1']
    %8 = vsyncpa [#allocation3], 0
    // Predicated region
    $region2: #{tpu_custom_call.1} parent=1 // pred_check
      _
    $region3: #{tpu_custom_call.1} parent=1 // pred_check_branch
      %10 = sbr.rel (0) target = $region5
    $region4: #{tpu_custom_call.1} parent=1 // pred_region
      _
    $region5: #{tpu_custom_call.1} parent=1 // pred_fallthru
      _
    // Predicated region
    $region6: #{tpu_custom_call.1} parent=1 // pred_check
      _
    $region7: #{tpu_custom_call.1} parent=1 // pred_check_branch
      %12 = sbr.rel (0) target = $region9
    $region8: #{tpu_custom_call.1} parent=1 // pred_region
      _
    $region9: #{tpu_custom_call.1} parent=1 // pred_fallthru
      _
    // Predicated region
    $region10: #{tpu_custom_call.1} parent=1 // pred_check
      _
    $region11: #{tpu_custom_call.1} parent=1 // pred_check_branch
      %14 = sbr.rel (0) target = $region13
    $region12: #{tpu_custom_call.1} parent=1 // pred_region
      _
    $region13: #{tpu_custom_call.1} parent=1 // pred_fallthru
      _
    %v15 = vld [vmem:[%s0] sm:$0xff]
    %v16 = vld [vmem:[%s0 + $0x8] sm:$0xff]
    %v17 = vld [vmem:[%s1] sm:$0xff]
    %v18 = vld [vmem:[%s1 + $0x8] sm:$0xff]
    %v19 = vld [vmem:[%s1 + $0x10] sm:$0xff]
    %v20 = vld [vmem:[%s1 + $0x18] sm:$0xff]
    %v21 = vld [vmem:[%s1 + $0x20] sm:$0xff]
    %v22 = vld [vmem:[%s1 + $0x28] sm:$0xff]
    %v23 = vld [vmem:[%s1 + $0x30] sm:$0xff]
    %v24 = vld [vmem:[%s1 + $0x38] sm:$0xff]
    %v25 = vld [vmem:[%s1 + $0x40] sm:$0xff]
    %v26 = vld [vmem:[%s1 + $0x48] sm:$0xff]
    %v27 = vld [vmem:[%s1 + $0x50] sm:$0xff]
    %v28 = vld [vmem:[%s1 + $0x58] sm:$0xff]
    %v29 = vld [vmem:[%s1 + $0x60] sm:$0xff]
    %v30 = vld [vmem:[%s1 + $0x68] sm:$0xff]
    %v31 = vld [vmem:[%s1 + $0x70] sm:$0xff]
    %v32 = vld [vmem:[%s1 + $0x78] sm:$0xff]
    %v33 = vld [vmem:[%s2] sm:$0x1]
    %v35 = vlaneseq
    %v36 = vshrl.u32 %v35, 7
    %v37 = vsub.s32 0, %v36
    %v38 = vrot.slane %v33, %v37
    %vm40 = vcmask 261120
    %v42 = vsel %vm40, %v15, 0
    %v45 = vsel %vm40, %v16, 0
    %v48 = vsel %vm40, %v17, 0
    %v51 = vsel %vm40, %v18, 0
    %v54 = vsel %vm40, %v19, 0
    %v57 = vsel %vm40, %v20, 0
    %v60 = vsel %vm40, %v21, 0
    %v63 = vsel %vm40, %v22, 0
    %v66 = vsel %vm40, %v23, 0
    %v69 = vsel %vm40, %v24, 0
    %v72 = vsel %vm40, %v25, 0
    %v75 = vsel %vm40, %v26, 0
    %v78 = vsel %vm40, %v27, 0
    %v81 = vsel %vm40, %v28, 0
    %v84 = vsel %vm40, %v29, 0
    %v87 = vsel %vm40, %v30, 0
    %v90 = vsel %vm40, %v31, 0
    %v93 = vsel %vm40, %v32, 0
    %95 = vmatprep.subr.mxu0 0.0
    %96 = vmatpush1.xpose.msra.mxu0 %v93
    %97 = vmatprep.subr.mxu0 0.0
    %98 = vmatpush1.xpose.msra.mxu0 %v90
    %99 = vmatprep.subr.mxu0 0.0
    %100 = vmatpush1.xpose.msra.mxu0 %v87
    %101 = vmatprep.subr.mxu0 0.0
    %102 = vmatpush1.xpose.msra.mxu0 %v84
    %103 = vmatprep.subr.mxu0 0.0
    %104 = vmatpush1.xpose.msra.mxu0 %v81
    %105 = vmatprep.subr.mxu0 0.0
    %106 = vmatpush1.xpose.msra.mxu0 %v78
    %107 = vmatprep.subr.mxu0 0.0
    %108 = vmatpush1.xpose.msra.mxu0 %v75
    %109 = vmatprep.subr.mxu0 0.0
    %110 = vmatpush1.xpose.msra.mxu0 %v72
    %111 = vmatprep.subr.mxu0 0.0
    %112 = vmatpush1.xpose.msra.mxu0 %v69
    %113 = vmatprep.subr.mxu0 0.0
    %114 = vmatpush1.xpose.msra.mxu0 %v66
    %115 = vmatprep.subr.mxu0 0.0
    %116 = vmatpush1.xpose.msra.mxu0 %v63
    %117 = vmatprep.subr.mxu0 0.0
    %118 = vmatpush1.xpose.msra.mxu0 %v60
    %119 = vmatprep.subr.mxu0 0.0
    %120 = vmatpush1.xpose.msra.mxu0 %v57
    %121 = vmatprep.subr.mxu0 0.0
    %122 = vmatpush1.xpose.msra.mxu0 %v54
    %123 = vmatprep.subr.mxu0 0.0
    %124 = vmatpush1.xpose.msra.mxu0 %v51
    %125 = vmatprep.subr.mxu0 0.0
    %126 = vmatpush1.xpose.msra.mxu0 %v48
    %127 = vmatprep.subr.mxu0 0.0
    %128 = vmatpush2.xpose.msra.mxu0 0.0
    %129 = vmatprep.subr.mxu0 0.0
    %130 = vmatpush2.xpose.msra.mxu0 0.0
    %131 = vmatprep.subr.mxu0 0.0
    %132 = vmatpush2.xpose.msra.mxu0 0.0
    %133 = vmatprep.subr.mxu0 0.0
    %134 = vmatpush2.xpose.msra.mxu0 0.0
    %135 = vmatprep.subr.mxu0 0.0
    %136 = vmatpush2.xpose.msra.mxu0 0.0
    %137 = vmatprep.subr.mxu0 0.0
    %138 = vmatpush2.xpose.msra.mxu0 0.0
    %139 = vmatprep.subr.mxu0 0.0
    %140 = vmatpush2.xpose.msra.mxu0 0.0
    %141 = vmatprep.subr.mxu0 0.0
    %142 = vmatpush2.xpose.msra.mxu0 0.0
    %143 = vmatprep.subr.mxu0 0.0
    %144 = vmatpush2.xpose.msra.mxu0 0.0
    %145 = vmatprep.subr.mxu0 0.0
    %146 = vmatpush2.xpose.msra.mxu0 0.0
    %147 = vmatprep.subr.mxu0 0.0
    %148 = vmatpush2.xpose.msra.mxu0 0.0
    %149 = vmatprep.subr.mxu0 0.0
    %150 = vmatpush2.xpose.msra.mxu0 0.0
    %151 = vmatprep.subr.mxu0 0.0
    %152 = vmatpush2.xpose.msra.mxu0 0.0
    %153 = vmatprep.subr.mxu0 0.0
    %154 = vmatpush2.xpose.msra.mxu0 0.0
    %155 = vmatprep.subr.mxu0 0.0
    %156 = vmatpush2.xpose.msra.mxu0 0.0
    %157 = vmatprep.subr.mxu0 0.0
    %158 = vmatpush2.xpose.msra.mxu0 0.0
    %159 = vmatprep.mubr.f32.mxu0 0.0
    %160 = vmatmul.mubr.f32.gmra.mxu0 %v42
    %v161 = vpop.f32.mrf.mxu0
    %v162 = vadd.f32 %v38, %v161
    %v163 = vpop.f32.mrf.mxu0
    %164 = vmatprep.mubr.f32.mxu0 0.0
    %165 = vmatmul.mubr.f32.gmra.mxu0 %v45
    %v166 = vpop.f32.mrf.mxu0
    %v167 = vadd.f32 %v38, %v166
    %v168 = vpop.f32.mrf.mxu0
    %169 = vdwg.mxu0
    %v170 = vtanh.pop %v162
    %v171 = vtanh.pop %v167
    %172 = vst [vmem:[#allocation2] sm:$0xff] %v170
    %173 = vst [vmem:[#allocation2 + $0x8] sm:$0xff] %v171
    // Predicated region
    $region14: #{tpu_custom_call.1} parent=1 // pred_check
      _
    $region15: #{tpu_custom_call.1} parent=1 // pred_check_branch
      %175 = sbr.rel (0) target = $region17
    $region16: #{tpu_custom_call.1} parent=1 // pred_region
      %s177 = ssub.s32 256, 256
      %178 = vsyncadd [#allocation3], %s177
      %s179 = sshll.u32 [#allocation2], 4
      %s180 = int_to_ptr.vmem [resolvable:$true] %s179
      %185 = dma.vmem_to_hbm [thread:$0]  %s180, 256, %s3, [#allocation3], 128, 128, 8
    $region17: #{tpu_custom_call.1} parent=1 // pred_fallthru
      _
    // Predicated region
    $region18: #{tpu_custom_call.1} parent=1 // pred_check
      _
    $region19: #{tpu_custom_call.1} parent=1 // pred_check_branch
      %187 = sbr.rel (0) target = $region21
    $region20: #{tpu_custom_call.1} parent=1 // pred_region
      %188 = dma.done [#allocation3], 256
    $region21: #{tpu_custom_call.1} parent=1 // pred_fallthru
      _
    %189 = vsyncpa [#allocation3], 1

</llo_original>
